<compile_context>
chip_gen: v5e
topology: v5e:2x2
jax: 0.10.0
libtpu: 0.0.40
codegen_flags: <defaults>
</compile_context>

<pallas_src>
import functools

import jax
import jax.numpy as jnp
from jax import lax
from jax.experimental import pallas as pl
from jax.experimental.pallas import tpu as pltpu

# ----------------------------- model hyper-params (small) -----------------------------
HIDDEN_SIZE = 32          # nn.LSTM hidden_size (50 in the original; 32 keeps 4H = 128 lanes)
TOTAL_DAYS = 16           # "input_size" in the PyTorch module (dataset.Days())
SEQ_LEN = 8               # sequence length fed to the LSTM
BATCH = 2
TRADE_LIMIT = 10.0
OUT_DIM = TOTAL_DAYS - 1  # trade_amount features
SUBLANE = 8               # pad batch to a full sublane group
LANE = 128                # vreg lane width; 4*HIDDEN_SIZE == LANE by construction
CONST_ROWS = 8            # 8-row-aligned header of the constant slab (wih / bias / b_head)


# ----------------------------------- Pallas kernel ------------------------------------
def portfolio_lstm_kernel(x_ref, cst_ref, out_ref, xw_ref, *, hidden, seq, trade_limit):
    b_pad = x_ref.shape[1]

    # Constant slab layout (rows): 0 = w_ih (gate order [i,f,o,g]), 1 = b_ih+b_hh,
    # 2 = head bias (128-lane padded), 3..7 = zeros,
    # 8..8+H-1 = W_hh (H, 4H), 8+H..8+2H-1 = head weights (H, 128-lane padded).
    wih = cst_ref[0:1, :]                                     # (1, 4H)
    bias = cst_ref[1:2, :]                                    # (1, 4H)
    b_head = cst_ref[2:3, :]                                  # (1, LANE)
    whh_bf = cst_ref[CONST_ROWS:CONST_ROWS + hidden, :].astype(jnp.bfloat16)       # (H, 4H)
    w_head_bf = cst_ref[CONST_ROWS + hidden:CONST_ROWS + 2 * hidden, :].astype(jnp.bfloat16)

    # Hoisted input projection: one vectorized lane-broadcast pass over the whole
    # sequence (input_size == 1, so this is a VPU multiply, never an MXU matmul).
    xw_ref[...] = x_ref[...] * wih[None, :, :] + bias[None, :, :]   # (S, B_pad, 4H)

    def step(t, carry):
        h, c = carry
        # Only the recurrent matmul + activations remain on the serial chain.
        gates = xw_ref[t] + jnp.dot(h.astype(jnp.bfloat16), whh_bf,
                                    preferred_element_type=jnp.float32)   # (B_pad, 4H)
        sig = jax.nn.sigmoid(gates[:, :3 * hidden])       # one EUP pass over [i | f | o]
        i_g = sig[:, 0 * hidden:1 * hidden]
        f_g = sig[:, 1 * hidden:2 * hidden]
        o_g = sig[:, 2 * hidden:3 * hidden]
        g_g = jnp.tanh(gates[:, 3 * hidden:])             # one EUP pass over [g]
        c_new = f_g * c + i_g * g_g                       # f32 elementwise state math
        h_new = o_g * jnp.tanh(c_new)
        return h_new, c_new

    h0 = jnp.zeros((b_pad, hidden), jnp.float32)
    c0 = jnp.zeros((b_pad, hidden), jnp.float32)
    h_last, _ = lax.fori_loop(0, seq, step, (h0, c0), unroll=True)

    # Fused heads, lane-dense 128-wide output:
    #   column 0 = relu(premium), columns 1..OUT_DIM = clipped trade_amount,
    #   remaining columns are zero (zero weights / zero bias) and sliced off in the wrapper.
    head = jnp.dot(h_last.astype(jnp.bfloat16), w_head_bf,
                   preferred_element_type=jnp.float32) + b_head
    col = lax.broadcasted_iota(jnp.int32, head.shape, 1)
    out_ref[...] = jnp.where(col == 0,
                             jnp.maximum(head, 0.0),
                             jnp.clip(head, -trade_limit, trade_limit))


# ------------------------------------- wrapper -----------------------------------------
def _reorder_gates(w, hidden):
    """PyTorch gate order along the 4H axis is [i, f, g, o]; reorder to [i, f, o, g]."""
    i, f, g, o = (w[k * hidden:(k + 1) * hidden] for k in range(4))
    return jnp.concatenate([i, f, o, g], axis=0)


def portfolio_lstm_forward(x, params, *, hidden=HIDDEN_SIZE, trade_limit=TRADE_LIMIT):
    """x: (batch, seq, 1) float32 — same layout as PyTorch batch_first input."""
    assert 4 * hidden == LANE, "kernel assumes 4*hidden == 128 lanes (pad gates to 64 if hidden=50)"
    b, s, _ = x.shape
    b_pad = ((b + SUBLANE - 1) // SUBLANE) * SUBLANE
    x_pad = jnp.pad(x, ((0, b_pad - b), (0, 0), (0, 0)))
    x_sbf = jnp.transpose(x_pad, (1, 0, 2))                          # (seq, b_pad, 1)

    wih = _reorder_gates(params["w_ih"], hidden)[:, 0]               # (4H,)
    bias = _reorder_gates(params["b_ih"] + params["b_hh"], hidden)   # (4H,)
    whh = _reorder_gates(params["w_hh"], hidden).T                   # (H, 4H)

    out_dim = params["w_trade"].shape[0]
    assert 1 + out_dim <= LANE
    # Fused head weights / bias, zero-padded to 128 lanes (lane-dense epilogue).
    w_head = jnp.zeros((hidden, LANE), jnp.float32)
    w_head = w_head.at[:, 0:1].set(params["w_prem"].T)
    w_head = w_head.at[:, 1:1 + out_dim].set(params["w_trade"].T)
    b_head = jnp.zeros((LANE,), jnp.float32)
    b_head = b_head.at[0].set(params["b_prem"][0])
    b_head = b_head.at[1:1 + out_dim].set(params["b_trade"])

    # Single constant slab (layout plumbing only): collapses 5 tiny operand DMAs into 1.
    consts = jnp.zeros((CONST_ROWS + 2 * hidden, LANE), jnp.float32)
    consts = consts.at[0].set(wih)
    consts = consts.at[1].set(bias)
    consts = consts.at[2].set(b_head)
    consts = consts.at[CONST_ROWS:CONST_ROWS + hidden].set(whh)
    consts = consts.at[CONST_ROWS + hidden:CONST_ROWS + 2 * hidden].set(w_head)

    kernel = functools.partial(portfolio_lstm_kernel, hidden=hidden, seq=s,
                               trade_limit=trade_limit)

    vmem = pl.BlockSpec(memory_space=pltpu.MemorySpace.VMEM)
    fused = pl.pallas_call(
        kernel,
        out_shape=jax.ShapeDtypeStruct((b_pad, LANE), jnp.float32),
        in_specs=[vmem, vmem],
        out_specs=vmem,
        scratch_shapes=[pltpu.VMEM((s, b_pad, 4 * hidden), jnp.float32)],  # hoisted xw
    )(x_sbf, consts)

    premium = fused[:b, :1]
    trade_amount = fused[:b, 1:1 + out_dim]
    return premium, trade_amount


# ---------------------------- pure-JAX reference (for checking) -----------------------
def portfolio_lstm_reference(x, params, *, hidden=HIDDEN_SIZE, trade_limit=TRADE_LIMIT):
    b = x.shape[0]
    wih_t = params["w_ih"].T
    whh_t = params["w_hh"].T
    bias = params["b_ih"] + params["b_hh"]

    def step(carry, x_t):
        h, c = carry
        gates = x_t @ wih_t + h @ whh_t + bias
        i_g = jax.nn.sigmoid(gates[:, 0 * hidden:1 * hidden])
        f_g = jax.nn.sigmoid(gates[:, 1 * hidden:2 * hidden])
        g_g = jnp.tanh(gates[:, 2 * hidden:3 * hidden])
        o_g = jax.nn.sigmoid(gates[:, 3 * hidden:4 * hidden])
        c = f_g * c + i_g * g_g
        h = o_g * jnp.tanh(c)
        return (h, c), None

    h0 = jnp.zeros((b, hidden), jnp.float32)
    c0 = jnp.zeros((b, hidden), jnp.float32)
    (h_last, _), _ = lax.scan(step, (h0, c0), jnp.transpose(x, (1, 0, 2)))
    premium = jnp.maximum(h_last @ params["w_prem"].T + params["b_prem"], 0.0)
    trade = jnp.clip(h_last @ params["w_trade"].T + params["b_trade"],
                     -trade_limit, trade_limit)
    return premium, trade


# ------------------------------------ param init ---------------------------------------
def init_params(key, hidden=HIDDEN_SIZE, out_dim=OUT_DIM):
    ks = jax.random.split(key, 8)
    scale = 1.0 / jnp.sqrt(hidden)  # mimics PyTorch default uniform(-1/sqrt(H), 1/sqrt(H))
    u = lambda k, shp: jax.random.uniform(k, shp, jnp.float32, -scale, scale)
    return {
        "w_ih": u(ks[0], (4 * hidden, 1)),
        "w_hh": u(ks[1], (4 * hidden, hidden)),
        "b_ih": u(ks[2], (4 * hidden,)),
        "b_hh": u(ks[3], (4 * hidden,)),
        "w_prem": u(ks[4], (1, hidden)),
        "b_prem": u(ks[5], (1,)),
        "w_trade": u(ks[6], (out_dim, hidden)),
        "b_trade": u(ks[7], (out_dim,)),
    }


if __name__ == "__main__":
    key = jax.random.PRNGKey(0)
    k_x, k_p = jax.random.split(key)
    x = jax.random.normal(k_x, (BATCH, SEQ_LEN, 1), jnp.float32)
    params = init_params(k_p)

    premium, trade_amount = jax.block_until_ready(
        jax.jit(portfolio_lstm_forward)(x, params))

    prem_ref, trade_ref = portfolio_lstm_reference(x, params)
    assert premium.shape == (BATCH, 1) and trade_amount.shape == (BATCH, OUT_DIM)
    # Tolerance relaxed vs. the pure-f32 version: the kernel feeds the MXU bf16 operands
    # (f32 accumulation); observed error is ~1e-3, bound set with ~10x margin.
    assert jnp.allclose(premium, prem_ref, atol=2e-2, rtol=2e-2)
    assert jnp.allclose(trade_amount, trade_ref, atol=2e-2, rtol=2e-2)
    print("KERNEL_OK")
</pallas_src>

<mosaic_0001>
module attributes {stable_mosaic.version = 11 : i64} {
  func.func @portfolio_lstm_kernel(%arg0: memref<8x8x1xf32, #tpu.memory_space<vmem>>, %arg1: memref<72x128xf32, #tpu.memory_space<vmem>>, %arg2: memref<8x128xf32, #tpu.memory_space<vmem>>, %arg3: memref<8x8x128xf32, #tpu.memory_space<vmem>>) attributes {dimension_semantics = [], scalar_prefetch = 0 : i64, scratch_operands = 1 : i64, tpu.core_type = #tpu.core_type<tc>} {
    %c0 = arith.constant 0 : index
    %c0_0 = arith.constant 0 : index
    %0 = vector.load %arg1[%c0, %c0_0] : memref<72x128xf32, #tpu.memory_space<vmem>>, vector<1x128xf32>
    %c1 = arith.constant 1 : index
    %c0_1 = arith.constant 0 : index
    %1 = vector.load %arg1[%c1, %c0_1] : memref<72x128xf32, #tpu.memory_space<vmem>>, vector<1x128xf32>
    %c2 = arith.constant 2 : index
    %c0_2 = arith.constant 0 : index
    %2 = vector.load %arg1[%c2, %c0_2] : memref<72x128xf32, #tpu.memory_space<vmem>>, vector<1x128xf32>
    %c8 = arith.constant 8 : index
    %c0_3 = arith.constant 0 : index
    %3 = vector.load %arg1[%c8, %c0_3] : memref<72x128xf32, #tpu.memory_space<vmem>>, vector<32x128xf32>
    %4 = arith.truncf %3 : vector<32x128xf32> to vector<32x128xbf16>
    %c40 = arith.constant 40 : index
    %c0_4 = arith.constant 0 : index
    %5 = vector.load %arg1[%c40, %c0_4] : memref<72x128xf32, #tpu.memory_space<vmem>>, vector<32x128xf32>
    %6 = arith.truncf %5 : vector<32x128xf32> to vector<32x128xbf16>
    %c0_5 = arith.constant 0 : index
    %c0_6 = arith.constant 0 : index
    %c0_7 = arith.constant 0 : index
    %7 = vector.load %arg0[%c0_5, %c0_6, %c0_7] : memref<8x8x1xf32, #tpu.memory_space<vmem>>, vector<8x8x1xf32>
    %8 = vector.shape_cast %0 : vector<1x128xf32> to vector<1x1x128xf32>
    %9 = vector.broadcast %7 : vector<8x8x1xf32> to vector<8x8x128xf32>
    %10 = vector.broadcast %8 : vector<1x1x128xf32> to vector<8x8x128xf32>
    %11 = arith.mulf %9, %10 : vector<8x8x128xf32>
    %12 = vector.shape_cast %1 : vector<1x128xf32> to vector<1x1x128xf32>
    %13 = vector.broadcast %12 : vector<1x1x128xf32> to vector<8x8x128xf32>
    %14 = arith.addf %11, %13 : vector<8x8x128xf32>
    %c0_8 = arith.constant 0 : index
    %c0_9 = arith.constant 0 : index
    %c0_10 = arith.constant 0 : index
    %15 = vector.load %arg3[%c0_8, %c0_9, %c0_10] : memref<8x8x128xf32, #tpu.memory_space<vmem>>, vector<8x8x128xf32>
    tpu.vector_store %arg3[%c0_8, %c0_9, %c0_10], %14 {strides = array<i32>} : memref<8x8x128xf32, #tpu.memory_space<vmem>>, vector<8x8x128xf32>,
    %cst = arith.constant 0.000000e+00 : f32
    %16 = vector.broadcast %cst : f32 to vector<8x32xf32>
    %cst_11 = arith.constant 0.000000e+00 : f32
    %17 = vector.broadcast %cst_11 : f32 to vector<8x32xf32>
    %c0_i32 = arith.constant 0 : i32
    %18 = arith.index_cast %c0_i32 : i32 to index
    %c0_12 = arith.constant 0 : index
    %c0_13 = arith.constant 0 : index
    %19 = vector.load %arg3[%18, %c0_12, %c0_13] : memref<8x8x128xf32, #tpu.memory_space<vmem>>, vector<1x8x128xf32>
    %20 = vector.shape_cast %19 : vector<1x8x128xf32> to vector<8x128xf32>
    %21 = arith.truncf %16 : vector<8x32xf32> to vector<8x32xbf16>
    %cst_14 = arith.constant dense<0.000000e+00> : vector<8x128xf32>
    %22 = tpu.matmul %21, %4, %cst_14 {dimension_numbers = #tpu.dot_dimension_numbers<[1], [0], [0], [1], [0, 0, 1, 1], [], []>} : vector<8x32xbf16>, vector<32x128xbf16>, vector<8x128xf32> -> vector<8x128xf32>
    %23 = arith.addf %20, %22 : vector<8x128xf32>
    %24 = vector.extract_strided_slice %23 {offsets = [0, 0], sizes = [8, 96], strides = [1, 1]} : vector<8x128xf32> to vector<8x96xf32>
    %25 = arith.negf %24 : vector<8x96xf32>
    %26 = math.exp %25 : vector<8x96xf32>
    %cst_15 = arith.constant 1.000000e+00 : f32
    %27 = vector.broadcast %cst_15 : f32 to vector<8x96xf32>
    %28 = arith.addf %27, %26 : vector<8x96xf32>
    %29 = arith.divf %27, %28 : vector<8x96xf32>
    %30 = vector.extract_strided_slice %29 {offsets = [0, 0], sizes = [8, 32], strides = [1, 1]} : vector<8x96xf32> to vector<8x32xf32>
    %31 = vector.extract_strided_slice %29 {offsets = [0, 32], sizes = [8, 32], strides = [1, 1]} : vector<8x96xf32> to vector<8x32xf32>
    %32 = vector.extract_strided_slice %29 {offsets = [0, 64], sizes = [8, 32], strides = [1, 1]} : vector<8x96xf32> to vector<8x32xf32>
    %33 = vector.extract_strided_slice %23 {offsets = [0, 96], sizes = [8, 32], strides = [1, 1]} : vector<8x128xf32> to vector<8x32xf32>
    %34 = math.tanh %33 : vector<8x32xf32>
    %35 = arith.mulf %31, %17 : vector<8x32xf32>
    %36 = arith.mulf %30, %34 : vector<8x32xf32>
    %37 = arith.addf %35, %36 : vector<8x32xf32>
    %38 = math.tanh %37 : vector<8x32xf32>
    %39 = arith.mulf %32, %38 : vector<8x32xf32>
    %c1_i32 = arith.constant 1 : i32
    %40 = arith.index_cast %c1_i32 : i32 to index
    %c0_16 = arith.constant 0 : index
    %c0_17 = arith.constant 0 : index
    %41 = vector.load %arg3[%40, %c0_16, %c0_17] : memref<8x8x128xf32, #tpu.memory_space<vmem>>, vector<1x8x128xf32>
    %42 = vector.shape_cast %41 : vector<1x8x128xf32> to vector<8x128xf32>
    %43 = arith.truncf %39 : vector<8x32xf32> to vector<8x32xbf16>
    %cst_18 = arith.constant dense<0.000000e+00> : vector<8x128xf32>
    %44 = tpu.matmul %43, %4, %cst_18 {dimension_numbers = #tpu.dot_dimension_numbers<[1], [0], [0], [1], [0, 0, 1, 1], [], []>} : vector<8x32xbf16>, vector<32x128xbf16>, vector<8x128xf32> -> vector<8x128xf32>
    %45 = arith.addf %42, %44 : vector<8x128xf32>
    %46 = vector.extract_strided_slice %45 {offsets = [0, 0], sizes = [8, 96], strides = [1, 1]} : vector<8x128xf32> to vector<8x96xf32>
    %47 = arith.negf %46 : vector<8x96xf32>
    %48 = math.exp %47 : vector<8x96xf32>
    %cst_19 = arith.constant 1.000000e+00 : f32
    %49 = vector.broadcast %cst_19 : f32 to vector<8x96xf32>
    %50 = arith.addf %49, %48 : vector<8x96xf32>
    %51 = arith.divf %49, %50 : vector<8x96xf32>
    %52 = vector.extract_strided_slice %51 {offsets = [0, 0], sizes = [8, 32], strides = [1, 1]} : vector<8x96xf32> to vector<8x32xf32>
    %53 = vector.extract_strided_slice %51 {offsets = [0, 32], sizes = [8, 32], strides = [1, 1]} : vector<8x96xf32> to vector<8x32xf32>
    %54 = vector.extract_strided_slice %51 {offsets = [0, 64], sizes = [8, 32], strides = [1, 1]} : vector<8x96xf32> to vector<8x32xf32>
    %55 = vector.extract_strided_slice %45 {offsets = [0, 96], sizes = [8, 32], strides = [1, 1]} : vector<8x128xf32> to vector<8x32xf32>
    %56 = math.tanh %55 : vector<8x32xf32>
    %57 = arith.mulf %53, %37 : vector<8x32xf32>
    %58 = arith.mulf %52, %56 : vector<8x32xf32>
    %59 = arith.addf %57, %58 : vector<8x32xf32>
    %60 = math.tanh %59 : vector<8x32xf32>
    %61 = arith.mulf %54, %60 : vector<8x32xf32>
    %c2_i32 = arith.constant 2 : i32
    %62 = arith.index_cast %c2_i32 : i32 to index
    %c0_20 = arith.constant 0 : index
    %c0_21 = arith.constant 0 : index
    %63 = vector.load %arg3[%62, %c0_20, %c0_21] : memref<8x8x128xf32, #tpu.memory_space<vmem>>, vector<1x8x128xf32>
    %64 = vector.shape_cast %63 : vector<1x8x128xf32> to vector<8x128xf32>
    %65 = arith.truncf %61 : vector<8x32xf32> to vector<8x32xbf16>
    %cst_22 = arith.constant dense<0.000000e+00> : vector<8x128xf32>
    %66 = tpu.matmul %65, %4, %cst_22 {dimension_numbers = #tpu.dot_dimension_numbers<[1], [0], [0], [1], [0, 0, 1, 1], [], []>} : vector<8x32xbf16>, vector<32x128xbf16>, vector<8x128xf32> -> vector<8x128xf32>
    %67 = arith.addf %64, %66 : vector<8x128xf32>
    %68 = vector.extract_strided_slice %67 {offsets = [0, 0], sizes = [8, 96], strides = [1, 1]} : vector<8x128xf32> to vector<8x96xf32>
    %69 = arith.negf %68 : vector<8x96xf32>
    %70 = math.exp %69 : vector<8x96xf32>
    %cst_23 = arith.constant 1.000000e+00 : f32
    %71 = vector.broadcast %cst_23 : f32 to vector<8x96xf32>
    %72 = arith.addf %71, %70 : vector<8x96xf32>
    %73 = arith.divf %71, %72 : vector<8x96xf32>
    %74 = vector.extract_strided_slice %73 {offsets = [0, 0], sizes = [8, 32], strides = [1, 1]} : vector<8x96xf32> to vector<8x32xf32>
    %75 = vector.extract_strided_slice %73 {offsets = [0, 32], sizes = [8, 32], strides = [1, 1]} : vector<8x96xf32> to vector<8x32xf32>
    %76 = vector.extract_strided_slice %73 {offsets = [0, 64], sizes = [8, 32], strides = [1, 1]} : vector<8x96xf32> to vector<8x32xf32>
    %77 = vector.extract_strided_slice %67 {offsets = [0, 96], sizes = [8, 32], strides = [1, 1]} : vector<8x128xf32> to vector<8x32xf32>
    %78 = math.tanh %77 : vector<8x32xf32>
    %79 = arith.mulf %75, %59 : vector<8x32xf32>
    %80 = arith.mulf %74, %78 : vector<8x32xf32>
    %81 = arith.addf %79, %80 : vector<8x32xf32>
    %82 = math.tanh %81 : vector<8x32xf32>
    %83 = arith.mulf %76, %82 : vector<8x32xf32>
    %c3_i32 = arith.constant 3 : i32
    %84 = arith.index_cast %c3_i32 : i32 to index
    %c0_24 = arith.constant 0 : index
    %c0_25 = arith.constant 0 : index
    %85 = vector.load %arg3[%84, %c0_24, %c0_25] : memref<8x8x128xf32, #tpu.memory_space<vmem>>, vector<1x8x128xf32>
    %86 = vector.shape_cast %85 : vector<1x8x128xf32> to vector<8x128xf32>
    %87 = arith.truncf %83 : vector<8x32xf32> to vector<8x32xbf16>
    %cst_26 = arith.constant dense<0.000000e+00> : vector<8x128xf32>
    %88 = tpu.matmul %87, %4, %cst_26 {dimension_numbers = #tpu.dot_dimension_numbers<[1], [0], [0], [1], [0, 0, 1, 1], [], []>} : vector<8x32xbf16>, vector<32x128xbf16>, vector<8x128xf32> -> vector<8x128xf32>
    %89 = arith.addf %86, %88 : vector<8x128xf32>
    %90 = vector.extract_strided_slice %89 {offsets = [0, 0], sizes = [8, 96], strides = [1, 1]} : vector<8x128xf32> to vector<8x96xf32>
    %91 = arith.negf %90 : vector<8x96xf32>
    %92 = math.exp %91 : vector<8x96xf32>
    %cst_27 = arith.constant 1.000000e+00 : f32
    %93 = vector.broadcast %cst_27 : f32 to vector<8x96xf32>
    %94 = arith.addf %93, %92 : vector<8x96xf32>
    %95 = arith.divf %93, %94 : vector<8x96xf32>
    %96 = vector.extract_strided_slice %95 {offsets = [0, 0], sizes = [8, 32], strides = [1, 1]} : vector<8x96xf32> to vector<8x32xf32>
    %97 = vector.extract_strided_slice %95 {offsets = [0, 32], sizes = [8, 32], strides = [1, 1]} : vector<8x96xf32> to vector<8x32xf32>
    %98 = vector.extract_strided_slice %95 {offsets = [0, 64], sizes = [8, 32], strides = [1, 1]} : vector<8x96xf32> to vector<8x32xf32>
    %99 = vector.extract_strided_slice %89 {offsets = [0, 96], sizes = [8, 32], strides = [1, 1]} : vector<8x128xf32> to vector<8x32xf32>
    %100 = math.tanh %99 : vector<8x32xf32>
    %101 = arith.mulf %97, %81 : vector<8x32xf32>
    %102 = arith.mulf %96, %100 : vector<8x32xf32>
    %103 = arith.addf %101, %102 : vector<8x32xf32>
    %104 = math.tanh %103 : vector<8x32xf32>
    %105 = arith.mulf %98, %104 : vector<8x32xf32>
    %c4_i32 = arith.constant 4 : i32
    %106 = arith.index_cast %c4_i32 : i32 to index
    %c0_28 = arith.constant 0 : index
    %c0_29 = arith.constant 0 : index
    %107 = vector.load %arg3[%106, %c0_28, %c0_29] : memref<8x8x128xf32, #tpu.memory_space<vmem>>, vector<1x8x128xf32>
    %108 = vector.shape_cast %107 : vector<1x8x128xf32> to vector<8x128xf32>
    %109 = arith.truncf %105 : vector<8x32xf32> to vector<8x32xbf16>
    %cst_30 = arith.constant dense<0.000000e+00> : vector<8x128xf32>
    %110 = tpu.matmul %109, %4, %cst_30 {dimension_numbers = #tpu.dot_dimension_numbers<[1], [0], [0], [1], [0, 0, 1, 1], [], []>} : vector<8x32xbf16>, vector<32x128xbf16>, vector<8x128xf32> -> vector<8x128xf32>
    %111 = arith.addf %108, %110 : vector<8x128xf32>
    %112 = vector.extract_strided_slice %111 {offsets = [0, 0], sizes = [8, 96], strides = [1, 1]} : vector<8x128xf32> to vector<8x96xf32>
    %113 = arith.negf %112 : vector<8x96xf32>
    %114 = math.exp %113 : vector<8x96xf32>
    %cst_31 = arith.constant 1.000000e+00 : f32
    %115 = vector.broadcast %cst_31 : f32 to vector<8x96xf32>
    %116 = arith.addf %115, %114 : vector<8x96xf32>
    %117 = arith.divf %115, %116 : vector<8x96xf32>
    %118 = vector.extract_strided_slice %117 {offsets = [0, 0], sizes = [8, 32], strides = [1, 1]} : vector<8x96xf32> to vector<8x32xf32>
    %119 = vector.extract_strided_slice %117 {offsets = [0, 32], sizes = [8, 32], strides = [1, 1]} : vector<8x96xf32> to vector<8x32xf32>
    %120 = vector.extract_strided_slice %117 {offsets = [0, 64], sizes = [8, 32], strides = [1, 1]} : vector<8x96xf32> to vector<8x32xf32>
    %121 = vector.extract_strided_slice %111 {offsets = [0, 96], sizes = [8, 32], strides = [1, 1]} : vector<8x128xf32> to vector<8x32xf32>
    %122 = math.tanh %121 : vector<8x32xf32>
    %123 = arith.mulf %119, %103 : vector<8x32xf32>
    %124 = arith.mulf %118, %122 : vector<8x32xf32>
    %125 = arith.addf %123, %124 : vector<8x32xf32>
    %126 = math.tanh %125 : vector<8x32xf32>
    %127 = arith.mulf %120, %126 : vector<8x32xf32>
    %c5_i32 = arith.constant 5 : i32
    %128 = arith.index_cast %c5_i32 : i32 to index
    %c0_32 = arith.constant 0 : index
    %c0_33 = arith.constant 0 : index
    %129 = vector.load %arg3[%128, %c0_32, %c0_33] : memref<8x8x128xf32, #tpu.memory_space<vmem>>, vector<1x8x128xf32>
    %130 = vector.shape_cast %129 : vector<1x8x128xf32> to vector<8x128xf32>
    %131 = arith.truncf %127 : vector<8x32xf32> to vector<8x32xbf16>
    %cst_34 = arith.constant dense<0.000000e+00> : vector<8x128xf32>
    %132 = tpu.matmul %131, %4, %cst_34 {dimension_numbers = #tpu.dot_dimension_numbers<[1], [0], [0], [1], [0, 0, 1, 1], [], []>} : vector<8x32xbf16>, vector<32x128xbf16>, vector<8x128xf32> -> vector<8x128xf32>
    %133 = arith.addf %130, %132 : vector<8x128xf32>
    %134 = vector.extract_strided_slice %133 {offsets = [0, 0], sizes = [8, 96], strides = [1, 1]} : vector<8x128xf32> to vector<8x96xf32>
    %135 = arith.negf %134 : vector<8x96xf32>
    %136 = math.exp %135 : vector<8x96xf32>
    %cst_35 = arith.constant 1.000000e+00 : f32
    %137 = vector.broadcast %cst_35 : f32 to vector<8x96xf32>
    %138 = arith.addf %137, %136 : vector<8x96xf32>
    %139 = arith.divf %137, %138 : vector<8x96xf32>
    %140 = vector.extract_strided_slice %139 {offsets = [0, 0], sizes = [8, 32], strides = [1, 1]} : vector<8x96xf32> to vector<8x32xf32>
    %141 = vector.extract_strided_slice %139 {offsets = [0, 32], sizes = [8, 32], strides = [1, 1]} : vector<8x96xf32> to vector<8x32xf32>
    %142 = vector.extract_strided_slice %139 {offsets = [0, 64], sizes = [8, 32], strides = [1, 1]} : vector<8x96xf32> to vector<8x32xf32>
    %143 = vector.extract_strided_slice %133 {offsets = [0, 96], sizes = [8, 32], strides = [1, 1]} : vector<8x128xf32> to vector<8x32xf32>
    %144 = math.tanh %143 : vector<8x32xf32>
    %145 = arith.mulf %141, %125 : vector<8x32xf32>
    %146 = arith.mulf %140, %144 : vector<8x32xf32>
    %147 = arith.addf %145, %146 : vector<8x32xf32>
    %148 = math.tanh %147 : vector<8x32xf32>
    %149 = arith.mulf %142, %148 : vector<8x32xf32>
    %c6_i32 = arith.constant 6 : i32
    %150 = arith.index_cast %c6_i32 : i32 to index
    %c0_36 = arith.constant 0 : index
    %c0_37 = arith.constant 0 : index
    %151 = vector.load %arg3[%150, %c0_36, %c0_37] : memref<8x8x128xf32, #tpu.memory_space<vmem>>, vector<1x8x128xf32>
    %152 = vector.shape_cast %151 : vector<1x8x128xf32> to vector<8x128xf32>
    %153 = arith.truncf %149 : vector<8x32xf32> to vector<8x32xbf16>
    %cst_38 = arith.constant dense<0.000000e+00> : vector<8x128xf32>
    %154 = tpu.matmul %153, %4, %cst_38 {dimension_numbers = #tpu.dot_dimension_numbers<[1], [0], [0], [1], [0, 0, 1, 1], [], []>} : vector<8x32xbf16>, vector<32x128xbf16>, vector<8x128xf32> -> vector<8x128xf32>
    %155 = arith.addf %152, %154 : vector<8x128xf32>
    %156 = vector.extract_strided_slice %155 {offsets = [0, 0], sizes = [8, 96], strides = [1, 1]} : vector<8x128xf32> to vector<8x96xf32>
    %157 = arith.negf %156 : vector<8x96xf32>
    %158 = math.exp %157 : vector<8x96xf32>
    %cst_39 = arith.constant 1.000000e+00 : f32
    %159 = vector.broadcast %cst_39 : f32 to vector<8x96xf32>
    %160 = arith.addf %159, %158 : vector<8x96xf32>
    %161 = arith.divf %159, %160 : vector<8x96xf32>
    %162 = vector.extract_strided_slice %161 {offsets = [0, 0], sizes = [8, 32], strides = [1, 1]} : vector<8x96xf32> to vector<8x32xf32>
    %163 = vector.extract_strided_slice %161 {offsets = [0, 32], sizes = [8, 32], strides = [1, 1]} : vector<8x96xf32> to vector<8x32xf32>
    %164 = vector.extract_strided_slice %161 {offsets = [0, 64], sizes = [8, 32], strides = [1, 1]} : vector<8x96xf32> to vector<8x32xf32>
    %165 = vector.extract_strided_slice %155 {offsets = [0, 96], sizes = [8, 32], strides = [1, 1]} : vector<8x128xf32> to vector<8x32xf32>
    %166 = math.tanh %165 : vector<8x32xf32>
    %167 = arith.mulf %163, %147 : vector<8x32xf32>
    %168 = arith.mulf %162, %166 : vector<8x32xf32>
    %169 = arith.addf %167, %168 : vector<8x32xf32>
    %170 = math.tanh %169 : vector<8x32xf32>
    %171 = arith.mulf %164, %170 : vector<8x32xf32>
    %c7_i32 = arith.constant 7 : i32
    %172 = arith.index_cast %c7_i32 : i32 to index
    %c0_40 = arith.constant 0 : index
    %c0_41 = arith.constant 0 : index
    %173 = vector.load %arg3[%172, %c0_40, %c0_41] : memref<8x8x128xf32, #tpu.memory_space<vmem>>, vector<1x8x128xf32>
    %174 = vector.shape_cast %173 : vector<1x8x128xf32> to vector<8x128xf32>
    %175 = arith.truncf %171 : vector<8x32xf32> to vector<8x32xbf16>
    %cst_42 = arith.constant dense<0.000000e+00> : vector<8x128xf32>
    %176 = tpu.matmul %175, %4, %cst_42 {dimension_numbers = #tpu.dot_dimension_numbers<[1], [0], [0], [1], [0, 0, 1, 1], [], []>} : vector<8x32xbf16>, vector<32x128xbf16>, vector<8x128xf32> -> vector<8x128xf32>
    %177 = arith.addf %174, %176 : vector<8x128xf32>
    %178 = vector.extract_strided_slice %177 {offsets = [0, 0], sizes = [8, 96], strides = [1, 1]} : vector<8x128xf32> to vector<8x96xf32>
    %179 = arith.negf %178 : vector<8x96xf32>
    %180 = math.exp %179 : vector<8x96xf32>
    %cst_43 = arith.constant 1.000000e+00 : f32
    %181 = vector.broadcast %cst_43 : f32 to vector<8x96xf32>
    %182 = arith.addf %181, %180 : vector<8x96xf32>
    %183 = arith.divf %181, %182 : vector<8x96xf32>
    %184 = vector.extract_strided_slice %183 {offsets = [0, 0], sizes = [8, 32], strides = [1, 1]} : vector<8x96xf32> to vector<8x32xf32>
    %185 = vector.extract_strided_slice %183 {offsets = [0, 32], sizes = [8, 32], strides = [1, 1]} : vector<8x96xf32> to vector<8x32xf32>
    %186 = vector.extract_strided_slice %183 {offsets = [0, 64], sizes = [8, 32], strides = [1, 1]} : vector<8x96xf32> to vector<8x32xf32>
    %187 = vector.extract_strided_slice %177 {offsets = [0, 96], sizes = [8, 32], strides = [1, 1]} : vector<8x128xf32> to vector<8x32xf32>
    %188 = math.tanh %187 : vector<8x32xf32>
    %189 = arith.mulf %185, %169 : vector<8x32xf32>
    %190 = arith.mulf %184, %188 : vector<8x32xf32>
    %191 = arith.addf %189, %190 : vector<8x32xf32>
    %192 = math.tanh %191 : vector<8x32xf32>
    %193 = arith.mulf %186, %192 : vector<8x32xf32>
    %c8_i32 = arith.constant 8 : i32
    %194 = arith.truncf %193 : vector<8x32xf32> to vector<8x32xbf16>
    %cst_44 = arith.constant dense<0.000000e+00> : vector<8x128xf32>
    %195 = tpu.matmul %194, %6, %cst_44 {dimension_numbers = #tpu.dot_dimension_numbers<[1], [0], [0], [1], [0, 0, 1, 1], [], []>} : vector<8x32xbf16>, vector<32x128xbf16>, vector<8x128xf32> -> vector<8x128xf32>
    %196 = vector.broadcast %2 : vector<1x128xf32> to vector<8x128xf32>
    %197 = arith.addf %195, %196 : vector<8x128xf32>
    %198 = tpu.iota {dimensions = array<i32: 1>} : vector<8x128xi32>
    %c0_i32_45 = arith.constant 0 : i32
    %199 = vector.broadcast %c0_i32_45 : i32 to vector<8x128xi32>
    %200 = arith.cmpi eq, %198, %199 : vector<8x128xi32>
    %cst_46 = arith.constant 0.000000e+00 : f32
    %201 = vector.broadcast %cst_46 : f32 to vector<8x128xf32>
    %202 = arith.maximumf %197, %201 : vector<8x128xf32>
    %cst_47 = arith.constant -1.000000e+01 : f32
    %cst_48 = arith.constant 1.000000e+01 : f32
    %203 = vector.broadcast %cst_47 : f32 to vector<8x128xf32>
    %204 = arith.maximumf %203, %197 : vector<8x128xf32>
    %205 = vector.broadcast %cst_48 : f32 to vector<8x128xf32>
    %206 = arith.minimumf %205, %204 : vector<8x128xf32>
    %207 = arith.select %200, %202, %206 : vector<8x128xi1>, vector<8x128xf32>
    %c0_49 = arith.constant 0 : index
    %c0_50 = arith.constant 0 : index
    %208 = vector.load %arg2[%c0_49, %c0_50] : memref<8x128xf32, #tpu.memory_space<vmem>>, vector<8x128xf32>
    tpu.vector_store %arg2[%c0_49, %c0_50], %207 {strides = array<i32>} : memref<8x128xf32, #tpu.memory_space<vmem>>, vector<8x128xf32>,
    return
  }
}

</mosaic_0001>

<llo_original>
// kernel: portfolio_lstm_forward.1
$region0: #{portfolio_lstm_forward.1}
  #allocation0 [shape = 'u32[]', space=smem, size = 0x4, offset = 0x4, fixed_abs, tag = 'smem constant byte address 0x4 - core index']
  #allocation1 [shape = 'u32[72,128]{1,0:T(1,128)}', space=vmem, size = 0x9000, scoped, tag = 'internal scratch']
  #allocation2 [shape = 'f32[8,8,128]{2,1,0:T(8,128)}', space=vmem, size = 0x8000, scoped, tag = 'scratch operand']
  %s0 = inlined_call_operand.vmem [shape: f32[8,8,1], index: 0, kind: input, shape index: {}]
  %s1 = inlined_call_operand.vmem [shape: f32[72,128], index: 1, kind: input, shape index: {}]
  %s2 = inlined_call_operand.vmem [shape: f32[8,128], index: 2, kind: output, shape index: {}]
  %s3 = sld [smem:[#allocation0]]
  $region18: #{portfolio_lstm_forward.1} parent=0
    _
  %s5 = ssub.s32 1, %s3
  %s6 = scalar_select 0, %s5, %s3
  // Predicated region
  $region2: #{portfolio_lstm_forward.1} parent=0 // pred_check
    _
  $region3: #{portfolio_lstm_forward.1} parent=0 // pred_check_branch
    %8 = sbr.rel (0) target = $region5
  $region4: #{portfolio_lstm_forward.1} parent=0 // pred_region
    _
  $region5: #{portfolio_lstm_forward.1} parent=0 // pred_fallthru
    _
  // Predicated region
  $region6: #{portfolio_lstm_forward.1} parent=0 // pred_check
    _
  $region7: #{portfolio_lstm_forward.1} parent=0 // pred_check_branch
    %10 = sbr.rel (0) target = $region9
  $region8: #{portfolio_lstm_forward.1} parent=0 // pred_region
    _
  $region9: #{portfolio_lstm_forward.1} parent=0 // pred_fallthru
    _
  %v12 = vld [vmem:[%s1] sm:$0x1]
  %v13 = vld [vmem:[%s1 + $0x1] sm:$0x1]
  %v14 = vld [vmem:[%s1 + $0x2] sm:$0x1]
  %v15 = vld [vmem:[%s1 + $0x8] sm:$0xff]
  %v16 = vld [vmem:[%s1 + $0x10] sm:$0xff]
  %v17 = vld [vmem:[%s1 + $0x18] sm:$0xff]
  %v18 = vld [vmem:[%s1 + $0x20] sm:$0xff]
  %v19 = vpack.c.bf16 %v16, %v15
  %v20 = vpack.c.bf16 %v18, %v17
  %v21 = vld [vmem:[%s1 + $0x28] sm:$0xff]
  %v22 = vld [vmem:[%s1 + $0x30] sm:$0xff]
  %v23 = vld [vmem:[%s1 + $0x38] sm:$0xff]
  %v24 = vld [vmem:[%s1 + $0x40] sm:$0xff]
  %v25 = vpack.c.bf16 %v22, %v21
  %v26 = vpack.c.bf16 %v24, %v23
  %v27 = vld [vmem:[%s0] sm:$0xff]
  %v28 = vld [vmem:[%s0 + $0x8] sm:$0xff]
  %v29 = vld [vmem:[%s0 + $0x10] sm:$0xff]
  %v30 = vld [vmem:[%s0 + $0x18] sm:$0xff]
  %v31 = vld [vmem:[%s0 + $0x20] sm:$0xff]
  %v32 = vld [vmem:[%s0 + $0x28] sm:$0xff]
  %v33 = vld [vmem:[%s0 + $0x30] sm:$0xff]
  %v34 = vld [vmem:[%s0 + $0x38] sm:$0xff]
  %36 = vset.pattern.permute.xlu0 0
  %37 = vperm.xlu0 %36, %v27
  %v38 = vpop.permute.xlu0 %37
  %41 = vset.pattern.permute.xlu0 0
  %42 = vperm.xlu0 %41, %v28
  %v43 = vpop.permute.xlu0 %42
  %46 = vset.pattern.permute.xlu0 0
  %47 = vperm.xlu0 %46, %v29
  %v48 = vpop.permute.xlu0 %47
  %51 = vset.pattern.permute.xlu0 0
  %52 = vperm.xlu0 %51, %v30
  %v53 = vpop.permute.xlu0 %52
  %56 = vset.pattern.permute.xlu0 0
  %57 = vperm.xlu0 %56, %v31
  %v58 = vpop.permute.xlu0 %57
  %61 = vset.pattern.permute.xlu0 0
  %62 = vperm.xlu0 %61, %v32
  %v63 = vpop.permute.xlu0 %62
  %66 = vset.pattern.permute.xlu0 0
  %67 = vperm.xlu0 %66, %v33
  %v68 = vpop.permute.xlu0 %67
  %71 = vset.pattern.permute.xlu0 0
  %72 = vperm.xlu0 %71, %v34
  %v73 = vpop.permute.xlu0 %72
  %v75 = vperm.slane %v12, 0
  %v76 = vmul.f32 %v38, %v75
  %v77 = vmul.f32 %v43, %v75
  %v78 = vmul.f32 %v48, %v75
  %v79 = vmul.f32 %v53, %v75
  %v80 = vmul.f32 %v58, %v75
  %v81 = vmul.f32 %v63, %v75
  %v82 = vmul.f32 %v68, %v75
  %v83 = vmul.f32 %v73, %v75
  %v84 = vperm.slane %v13, 0
  %v85 = vadd.f32 %v76, %v84
  %v86 = vadd.f32 %v77, %v84
  %v87 = vadd.f32 %v78, %v84
  %v88 = vadd.f32 %v79, %v84
  %v89 = vadd.f32 %v80, %v84
  %v90 = vadd.f32 %v81, %v84
  %v91 = vadd.f32 %v82, %v84
  %v92 = vadd.f32 %v83, %v84
  %93 = vst [vmem:[#allocation2] sm:$0xff] %v85
  %94 = vst [vmem:[#allocation2 + $0x8] sm:$0xff] %v86
  %95 = vst [vmem:[#allocation2 + $0x10] sm:$0xff] %v87
  %96 = vst [vmem:[#allocation2 + $0x18] sm:$0xff] %v88
  %97 = vst [vmem:[#allocation2 + $0x20] sm:$0xff] %v89
  %98 = vst [vmem:[#allocation2 + $0x28] sm:$0xff] %v90
  %99 = vst [vmem:[#allocation2 + $0x30] sm:$0xff] %v91
  %100 = vst [vmem:[#allocation2 + $0x38] sm:$0xff] %v92
  %v101 = vld [vmem:[#allocation2] sm:$0xff]
  %vm102 = vcmask 261120
  %v104 = vsel %vm102, 0, 0
  %106 = vmatpush.bf16.msra.mxu0 0
  %107 = vmatpush.bf16.msra.mxu0 0
  %108 = vmatpush.bf16.msra.mxu0 0
  %109 = vmatpush.bf16.msra.mxu0 0
  %110 = vmatpush.bf16.msra.mxu0 0
  %111 = vmatpush.bf16.msra.mxu0 0
  %112 = vmatpush.bf16.msra.mxu0 %v20
  %113 = vmatpush.bf16.msra.mxu0 %v19
  %114 = vmatmul.bf16.gmra.mxu0 %v104
  %v115 = vpop.f32.mrf.mxu0
  %v116 = vadd.f32 0.0, %v115
  %v117 = vpop.f32.mrf.mxu0
  %118 = vdwg.mxu0
  %v119 = vadd.f32 %v101, %v116
  %v120 = vxor.u32 %v119, 2147483648
  %v121 = vmul.f32 %v120, 1.442695
  %v122 = vpow.pop %v121
  %v123 = vadd.f32 %v122, 1.0
  %v124 = vrcp.pop %v123
  %v125 = vmul.f32 %v123, %v124
  %v126 = vsub.f32 1.0, %v125
  %v127 = vmul.f32 %v124, %v126
  %v128 = vadd.f32 %v124, %v127
  %vm129 = vweird.f32 %v123
  %vm130 = vweird.f32 %v124
  %vm131 = vmor %vm129, %vm130
  %v132 = vsel %vm131, %v124, %v128
  %v133 = vand.u32 2147483647, %v123
  %vm134 = vcmp.eq.f32.partialorder %v133, 8.507059e+37
  %v135 = vand.u32 %v123, 2147483648
  %v136 = vor.u32 1.1754944e-38, %v135
  %v137 = vsel %vm134, %v136, %v132
  %v138 = vmul.f32 1.0, %v137
  %v139 = vtanh.pop %v119
  %v140 = vmul.f32 %v138, 0.0
  %142 = vrot.lane.b32.xlu0 %v139, 32
  %v143 = vpop.permute.xlu0 %142
  %v145 = vmul.f32 %v138, %v143
  %147 = vrot.lane.b32.xlu0 %v145, 32
  %v148 = vpop.permute.xlu0 %147
  %v150 = vadd.f32 %v140, %v148
  %v151 = vtanh.pop %v150
  %153 = vrot.lane.b32.xlu0 %v151, 32
  %v154 = vpop.permute.xlu0 %153
  %v156 = vmul.f32 %v138, %v154
  %s157 = scalar_lea.vmem [#allocation2], 8
  %v158 = vld [vmem:[%s157] sm:$0xff]
  %v159 = vpack.c.bf16 %v156, %v156
  %161 = vrot.lane.b32.xlu0 %v159, 64
  %v162 = vpop.permute.xlu0 %161
  %v164 = vsel %vm102, %v162, 0
  %166 = vmatpush.bf16.msra.mxu0 0
  %167 = vmatpush.bf16.msra.mxu0 0
  %168 = vmatpush.bf16.msra.mxu0 0
  %169 = vmatpush.bf16.msra.mxu0 0
  %170 = vmatpush.bf16.msra.mxu0 0
  %171 = vmatpush.bf16.msra.mxu0 0
  %172 = vmatpush.bf16.msra.mxu0 %v20
  %173 = vmatpush.bf16.msra.mxu0 %v19
  %174 = vmatmul.bf16.gmra.mxu0 %v164
  %v175 = vpop.f32.mrf.mxu0
  %v176 = vadd.f32 0.0, %v175
  %v177 = vpop.f32.mrf.mxu0
  %178 = vdwg.mxu0
  %v179 = vadd.f32 %v158, %v176
  %v180 = vxor.u32 %v179, 2147483648
  %v181 = vmul.f32 %v180, 1.442695
  %v182 = vpow.pop %v181
  %v183 = vadd.f32 %v182, 1.0
  %v184 = vrcp.pop %v183
  %v185 = vmul.f32 %v183, %v184
  %v186 = vsub.f32 1.0, %v185
  %v187 = vmul.f32 %v184, %v186
  %v188 = vadd.f32 %v184, %v187
  %vm189 = vweird.f32 %v183
  %vm190 = vweird.f32 %v184
  %vm191 = vmor %vm189, %vm190
  %v192 = vsel %vm191, %v184, %v188
  %v193 = vand.u32 2147483647, %v183
  %vm194 = vcmp.eq.f32.partialorder %v193, 8.507059e+37
  %v195 = vand.u32 %v183, 2147483648
  %v196 = vor.u32 1.1754944e-38, %v195
  %v197 = vsel %vm194, %v196, %v192
  %v198 = vmul.f32 1.0, %v197
  %v199 = vtanh.pop %v179
  %v200 = vmul.f32 %v198, %v150
  %202 = vrot.lane.b32.xlu0 %v199, 32
  %v203 = vpop.permute.xlu0 %202
  %v205 = vmul.f32 %v198, %v203
  %207 = vrot.lane.b32.xlu0 %v205, 32
  %v208 = vpop.permute.xlu0 %207
  %v210 = vadd.f32 %v200, %v208
  %v211 = vtanh.pop %v210
  %213 = vrot.lane.b32.xlu0 %v211, 32
  %v214 = vpop.permute.xlu0 %213
  %v216 = vmul.f32 %v198, %v214
  %s217 = scalar_lea.vmem [#allocation2], 16
  %v218 = vld [vmem:[%s217] sm:$0xff]
  %v219 = vpack.c.bf16 %v216, %v216
  %221 = vrot.lane.b32.xlu0 %v219, 64
  %v222 = vpop.permute.xlu0 %221
  %v224 = vsel %vm102, %v222, 0
  %226 = vmatpush.bf16.msra.mxu0 0
  %227 = vmatpush.bf16.msra.mxu0 0
  %228 = vmatpush.bf16.msra.mxu0 0
  %229 = vmatpush.bf16.msra.mxu0 0
  %230 = vmatpush.bf16.msra.mxu0 0
  %231 = vmatpush.bf16.msra.mxu0 0
  %232 = vmatpush.bf16.msra.mxu0 %v20
  %233 = vmatpush.bf16.msra.mxu0 %v19
  %234 = vmatmul.bf16.gmra.mxu0 %v224
  %v235 = vpop.f32.mrf.mxu0
  %v236 = vadd.f32 0.0, %v235
  %v237 = vpop.f32.mrf.mxu0
  %238 = vdwg.mxu0
  %v239 = vadd.f32 %v218, %v236
  %v240 = vxor.u32 %v239, 2147483648
  %v241 = vmul.f32 %v240, 1.442695
  %v242 = vpow.pop %v241
  %v243 = vadd.f32 %v242, 1.0
  %v244 = vrcp.pop %v243
  %v245 = vmul.f32 %v243, %v244
  %v246 = vsub.f32 1.0, %v245
  %v247 = vmul.f32 %v244, %v246
  %v248 = vadd.f32 %v244, %v247
  %vm249 = vweird.f32 %v243
  %vm250 = vweird.f32 %v244
  %vm251 = vmor %vm249, %vm250
  %v252 = vsel %vm251, %v244, %v248
  %v253 = vand.u32 2147483647, %v243
  %vm254 = vcmp.eq.f32.partialorder %v253, 8.507059e+37
  %v255 = vand.u32 %v243, 2147483648
  %v256 = vor.u32 1.1754944e-38, %v255
  %v257 = vsel %vm254, %v256, %v252
  %v258 = vmul.f32 1.0, %v257
  %v259 = vtanh.pop %v239
  %v260 = vmul.f32 %v258, %v210
  %262 = vrot.lane.b32.xlu0 %v259, 32
  %v263 = vpop.permute.xlu0 %262
  %v265 = vmul.f32 %v258, %v263
  %267 = vrot.lane.b32.xlu0 %v265, 32
  %v268 = vpop.permute.xlu0 %267
  %v270 = vadd.f32 %v260, %v268
  %v271 = vtanh.pop %v270
  %273 = vrot.lane.b32.xlu0 %v271, 32
  %v274 = vpop.permute.xlu0 %273
  %v276 = vmul.f32 %v258, %v274
  %s277 = scalar_lea.vmem [#allocation2], 24
  %v278 = vld [vmem:[%s277] sm:$0xff]
  %v279 = vpack.c.bf16 %v276, %v276
  %281 = vrot.lane.b32.xlu0 %v279, 64
  %v282 = vpop.permute.xlu0 %281
  %v284 = vsel %vm102, %v282, 0
  %286 = vmatpush.bf16.msra.mxu0 0
  %287 = vmatpush.bf16.msra.mxu0 0
  %288 = vmatpush.bf16.msra.mxu0 0
  %289 = vmatpush.bf16.msra.mxu0 0
  %290 = vmatpush.bf16.msra.mxu0 0
  %291 = vmatpush.bf16.msra.mxu0 0
  %292 = vmatpush.bf16.msra.mxu0 %v20
  %293 = vmatpush.bf16.msra.mxu0 %v19
  %294 = vmatmul.bf16.gmra.mxu0 %v284
  %v295 = vpop.f32.mrf.mxu0
  %v296 = vadd.f32 0.0, %v295
  %v297 = vpop.f32.mrf.mxu0
  %298 = vdwg.mxu0
  %v299 = vadd.f32 %v278, %v296
  %v300 = vxor.u32 %v299, 2147483648
  %v301 = vmul.f32 %v300, 1.442695
  %v302 = vpow.pop %v301
  %v303 = vadd.f32 %v302, 1.0
  %v304 = vrcp.pop %v303
  %v305 = vmul.f32 %v303, %v304
  %v306 = vsub.f32 1.0, %v305
  %v307 = vmul.f32 %v304, %v306
  %v308 = vadd.f32 %v304, %v307
  %vm309 = vweird.f32 %v303
  %vm310 = vweird.f32 %v304
  %vm311 = vmor %vm309, %vm310
  %v312 = vsel %vm311, %v304, %v308
  %v313 = vand.u32 2147483647, %v303
  %vm314 = vcmp.eq.f32.partialorder %v313, 8.507059e+37
  %v315 = vand.u32 %v303, 2147483648
  %v316 = vor.u32 1.1754944e-38, %v315
  %v317 = vsel %vm314, %v316, %v312
  %v318 = vmul.f32 1.0, %v317
  %v319 = vtanh.pop %v299
  %v320 = vmul.f32 %v318, %v270
  %322 = vrot.lane.b32.xlu0 %v319, 32
  %v323 = vpop.permute.xlu0 %322
  %v325 = vmul.f32 %v318, %v323
  %327 = vrot.lane.b32.xlu0 %v325, 32
  %v328 = vpop.permute.xlu0 %327
  %v330 = vadd.f32 %v320, %v328
  %v331 = vtanh.pop %v330
  %333 = vrot.lane.b32.xlu0 %v331, 32
  %v334 = vpop.permute.xlu0 %333
  %v336 = vmul.f32 %v318, %v334
  %s337 = scalar_lea.vmem [#allocation2], 32
  %v338 = vld [vmem:[%s337] sm:$0xff]
  %v339 = vpack.c.bf16 %v336, %v336
  %341 = vrot.lane.b32.xlu0 %v339, 64
  %v342 = vpop.permute.xlu0 %341
  %v344 = vsel %vm102, %v342, 0
  %346 = vmatpush.bf16.msra.mxu0 0
  %347 = vmatpush.bf16.msra.mxu0 0
  %348 = vmatpush.bf16.msra.mxu0 0
  %349 = vmatpush.bf16.msra.mxu0 0
  %350 = vmatpush.bf16.msra.mxu0 0
  %351 = vmatpush.bf16.msra.mxu0 0
  %352 = vmatpush.bf16.msra.mxu0 %v20
  %353 = vmatpush.bf16.msra.mxu0 %v19
  %354 = vmatmul.bf16.gmra.mxu0 %v344
  %v355 = vpop.f32.mrf.mxu0
  %v356 = vadd.f32 0.0, %v355
  %v357 = vpop.f32.mrf.mxu0
  %358 = vdwg.mxu0
  %v359 = vadd.f32 %v338, %v356
  %v360 = vxor.u32 %v359, 2147483648
  %v361 = vmul.f32 %v360, 1.442695
  %v362 = vpow.pop %v361
  %v363 = vadd.f32 %v362, 1.0
  %v364 = vrcp.pop %v363
  %v365 = vmul.f32 %v363, %v364
  %v366 = vsub.f32 1.0, %v365
  %v367 = vmul.f32 %v364, %v366
  %v368 = vadd.f32 %v364, %v367
  %vm369 = vweird.f32 %v363
  %vm370 = vweird.f32 %v364
  %vm371 = vmor %vm369, %vm370
  %v372 = vsel %vm371, %v364, %v368
  %v373 = vand.u32 2147483647, %v363
  %vm374 = vcmp.eq.f32.partialorder %v373, 8.507059e+37
  %v375 = vand.u32 %v363, 2147483648
  %v376 = vor.u32 1.1754944e-38, %v375
  %v377 = vsel %vm374, %v376, %v372
  %v378 = vmul.f32 1.0, %v377
  %v379 = vtanh.pop %v359
  %v380 = vmul.f32 %v378, %v330
  %382 = vrot.lane.b32.xlu0 %v379, 32
  %v383 = vpop.permute.xlu0 %382
  %v385 = vmul.f32 %v378, %v383
  %387 = vrot.lane.b32.xlu0 %v385, 32
  %v388 = vpop.permute.xlu0 %387
  %v390 = vadd.f32 %v380, %v388
  %v391 = vtanh.pop %v390
  %393 = vrot.lane.b32.xlu0 %v391, 32
  %v394 = vpop.permute.xlu0 %393
  %v396 = vmul.f32 %v378, %v394
  %s397 = scalar_lea.vmem [#allocation2], 40
  %v398 = vld [vmem:[%s397] sm:$0xff]
  %v399 = vpack.c.bf16 %v396, %v396
  %401 = vrot.lane.b32.xlu0 %v399, 64
  %v402 = vpop.permute.xlu0 %401
  %v404 = vsel %vm102, %v402, 0
  %406 = vmatpush.bf16.msra.mxu0 0
  %407 = vmatpush.bf16.msra.mxu0 0
  %408 = vmatpush.bf16.msra.mxu0 0
  %409 = vmatpush.bf16.msra.mxu0 0
  %410 = vmatpush.bf16.msra.mxu0 0
  %411 = vmatpush.bf16.msra.mxu0 0
  %412 = vmatpush.bf16.msra.mxu0 %v20
  %413 = vmatpush.bf16.msra.mxu0 %v19
  %414 = vmatmul.bf16.gmra.mxu0 %v404
  %v415 = vpop.f32.mrf.mxu0
  %v416 = vadd.f32 0.0, %v415
  %v417 = vpop.f32.mrf.mxu0
  %418 = vdwg.mxu0
  %v419 = vadd.f32 %v398, %v416
  %v420 = vxor.u32 %v419, 2147483648
  %v421 = vmul.f32 %v420, 1.442695
  %v422 = vpow.pop %v421
  %v423 = vadd.f32 %v422, 1.0
  %v424 = vrcp.pop %v423
  %v425 = vmul.f32 %v423, %v424
  %v426 = vsub.f32 1.0, %v425
  %v427 = vmul.f32 %v424, %v426
  %v428 = vadd.f32 %v424, %v427
  %vm429 = vweird.f32 %v423
  %vm430 = vweird.f32 %v424
  %vm431 = vmor %vm429, %vm430
  %v432 = vsel %vm431, %v424, %v428
  %v433 = vand.u32 2147483647, %v423
  %vm434 = vcmp.eq.f32.partialorder %v433, 8.507059e+37
  %v435 = vand.u32 %v423, 2147483648
  %v436 = vor.u32 1.1754944e-38, %v435
  %v437 = vsel %vm434, %v436, %v432
  %v438 = vmul.f32 1.0, %v437
  %v439 = vtanh.pop %v419
  %v440 = vmul.f32 %v438, %v390
  %442 = vrot.lane.b32.xlu0 %v439, 32
  %v443 = vpop.permute.xlu0 %442
  %v445 = vmul.f32 %v438, %v443
  %447 = vrot.lane.b32.xlu0 %v445, 32
  %v448 = vpop.permute.xlu0 %447
  %v450 = vadd.f32 %v440, %v448
  %v451 = vtanh.pop %v450
  %453 = vrot.lane.b32.xlu0 %v451, 32
  %v454 = vpop.permute.xlu0 %453
  %v456 = vmul.f32 %v438, %v454
  %s457 = scalar_lea.vmem [#allocation2], 48
  %v458 = vld [vmem:[%s457] sm:$0xff]
  %v459 = vpack.c.bf16 %v456, %v456
  %461 = vrot.lane.b32.xlu0 %v459, 64
  %v462 = vpop.permute.xlu0 %461
  %v464 = vsel %vm102, %v462, 0
  %466 = vmatpush.bf16.msra.mxu0 0
  %467 = vmatpush.bf16.msra.mxu0 0
  %468 = vmatpush.bf16.msra.mxu0 0
  %469 = vmatpush.bf16.msra.mxu0 0
  %470 = vmatpush.bf16.msra.mxu0 0
  %471 = vmatpush.bf16.msra.mxu0 0
  %472 = vmatpush.bf16.msra.mxu0 %v20
  %473 = vmatpush.bf16.msra.mxu0 %v19
  %474 = vmatmul.bf16.gmra.mxu0 %v464
  %v475 = vpop.f32.mrf.mxu0
  %v476 = vadd.f32 0.0, %v475
  %v477 = vpop.f32.mrf.mxu0
  %478 = vdwg.mxu0
  %v479 = vadd.f32 %v458, %v476
  %v480 = vxor.u32 %v479, 2147483648
  %v481 = vmul.f32 %v480, 1.442695
  %v482 = vpow.pop %v481
  %v483 = vadd.f32 %v482, 1.0
  %v484 = vrcp.pop %v483
  %v485 = vmul.f32 %v483, %v484
  %v486 = vsub.f32 1.0, %v485
  %v487 = vmul.f32 %v484, %v486
  %v488 = vadd.f32 %v484, %v487
  %vm489 = vweird.f32 %v483
  %vm490 = vweird.f32 %v484
  %vm491 = vmor %vm489, %vm490
  %v492 = vsel %vm491, %v484, %v488
  %v493 = vand.u32 2147483647, %v483
  %vm494 = vcmp.eq.f32.partialorder %v493, 8.507059e+37
  %v495 = vand.u32 %v483, 2147483648
  %v496 = vor.u32 1.1754944e-38, %v495
  %v497 = vsel %vm494, %v496, %v492
  %v498 = vmul.f32 1.0, %v497
  %v499 = vtanh.pop %v479
  %v500 = vmul.f32 %v498, %v450
  %502 = vrot.lane.b32.xlu0 %v499, 32
  %v503 = vpop.permute.xlu0 %502
  %v505 = vmul.f32 %v498, %v503
  %507 = vrot.lane.b32.xlu0 %v505, 32
  %v508 = vpop.permute.xlu0 %507
  %v510 = vadd.f32 %v500, %v508
  %v511 = vtanh.pop %v510
  %513 = vrot.lane.b32.xlu0 %v511, 32
  %v514 = vpop.permute.xlu0 %513
  %v516 = vmul.f32 %v498, %v514
  %s517 = scalar_lea.vmem [#allocation2], 56
  %v518 = vld [vmem:[%s517] sm:$0xff]
  %v519 = vpack.c.bf16 %v516, %v516
  %521 = vrot.lane.b32.xlu0 %v519, 64
  %v522 = vpop.permute.xlu0 %521
  %v524 = vsel %vm102, %v522, 0
  %526 = vmatpush.bf16.msra.mxu0 0
  %527 = vmatpush.bf16.msra.mxu0 0
  %528 = vmatpush.bf16.msra.mxu0 0
  %529 = vmatpush.bf16.msra.mxu0 0
  %530 = vmatpush.bf16.msra.mxu0 0
  %531 = vmatpush.bf16.msra.mxu0 0
  %532 = vmatpush.bf16.msra.mxu0 %v20
  %533 = vmatpush.bf16.msra.mxu0 %v19
  %534 = vmatmul.bf16.gmra.mxu0 %v524
  %v535 = vpop.f32.mrf.mxu0
  %v536 = vadd.f32 0.0, %v535
  %v537 = vpop.f32.mrf.mxu0
  %538 = vdwg.mxu0
  %v539 = vadd.f32 %v518, %v536
  %v540 = vxor.u32 %v539, 2147483648
  %v541 = vmul.f32 %v540, 1.442695
  %v542 = vpow.pop %v541
  %v543 = vadd.f32 %v542, 1.0
  %v544 = vrcp.pop %v543
  %v545 = vmul.f32 %v543, %v544
  %v546 = vsub.f32 1.0, %v545
  %v547 = vmul.f32 %v544, %v546
  %v548 = vadd.f32 %v544, %v547
  %vm549 = vweird.f32 %v543
  %vm550 = vweird.f32 %v544
  %vm551 = vmor %vm549, %vm550
  %v552 = vsel %vm551, %v544, %v548
  %v553 = vand.u32 2147483647, %v543
  %vm554 = vcmp.eq.f32.partialorder %v553, 8.507059e+37
  %v555 = vand.u32 %v543, 2147483648
  %v556 = vor.u32 1.1754944e-38, %v555
  %v557 = vsel %vm554, %v556, %v552
  %v558 = vmul.f32 1.0, %v557
  %v559 = vtanh.pop %v539
  %v560 = vmul.f32 %v558, %v510
  %562 = vrot.lane.b32.xlu0 %v559, 32
  %v563 = vpop.permute.xlu0 %562
  %v565 = vmul.f32 %v558, %v563
  %567 = vrot.lane.b32.xlu0 %v565, 32
  %v568 = vpop.permute.xlu0 %567
  %v570 = vadd.f32 %v560, %v568
  %v571 = vtanh.pop %v570
  %573 = vrot.lane.b32.xlu0 %v571, 32
  %v574 = vpop.permute.xlu0 %573
  %v576 = vmul.f32 %v558, %v574
  %v577 = vpack.c.bf16 %v576, %v576
  %v578 = vperm.slane %v14, 0
  %580 = vrot.lane.b32.xlu0 %v577, 64
  %v581 = vpop.permute.xlu0 %580
  %v583 = vsel %vm102, %v581, 0
  %585 = vmatpush.bf16.msra.mxu0 0
  %586 = vmatpush.bf16.msra.mxu0 0
  %587 = vmatpush.bf16.msra.mxu0 0
  %588 = vmatpush.bf16.msra.mxu0 0
  %589 = vmatpush.bf16.msra.mxu0 0
  %590 = vmatpush.bf16.msra.mxu0 0
  %591 = vmatpush.bf16.msra.mxu0 %v26
  %592 = vmatpush.bf16.msra.mxu0 %v25
  %593 = vmatmul.bf16.gmra.mxu0 %v583
  %v594 = vpop.f32.mrf.mxu0
  %v595 = vadd.f32 %v578, %v594
  %v596 = vpop.f32.mrf.mxu0
  %597 = vdwg.mxu0
  %v598 = vlaneseq
  %v599 = vand.u32 %v598, 127
  %vm600 = vcmp.eq.s32.totalorder %v599, 0
  %v601 = vmax.f32 %v595, 0.0
  %v602 = vmax.f32 %v595, -10.0
  %v603 = vmin.f32 %v602, 10.0
  %v604 = vsel %vm600, %v601, %v603
  %605 = vst [vmem:[%s2] sm:$0xff] %v604
  // Predicated region
  $region10: #{portfolio_lstm_forward.1} parent=0 // pred_check
    _
  $region11: #{portfolio_lstm_forward.1} parent=0 // pred_check_branch
    %607 = sbr.rel (0) target = $region13
  $region12: #{portfolio_lstm_forward.1} parent=0 // pred_region
    _
  $region13: #{portfolio_lstm_forward.1} parent=0 // pred_fallthru
    _
  // Predicated region
  $region14: #{portfolio_lstm_forward.1} parent=0 // pred_check
    _
  $region15: #{portfolio_lstm_forward.1} parent=0 // pred_check_branch
    %609 = sbr.rel (0) target = $region17
  $region16: #{portfolio_lstm_forward.1} parent=0 // pred_region
    _
  $region17: #{portfolio_lstm_forward.1} parent=0 // pred_fallthru
    _

</llo_original>
